<compile_context>
chip_gen: v7x
topology: tpu7x:2x2x1
jax: 0.10.0
libtpu: 0.0.40
codegen_flags: <defaults>
</compile_context>

<pallas_src>
import functools

import jax
import jax.numpy as jnp
from jax.experimental import pallas as pl
from jax.experimental.pallas import tpu as pltpu

# ITU-R gray coefficients used by the module (divided by 256, as in get_gray).
_C0 = 65.738 / 256.0
_C1 = 129.057 / 256.0
_C2 = 25.064 / 256.0


def _to_gray(xb, c):
    """xb: (NB, C, R, W) block -> (NB, R, W) float32 gray image."""
    if c == 3:
        return (_C0 * xb[:, 0].astype(jnp.float32)
                + _C1 * xb[:, 1].astype(jnp.float32)
                + _C2 * xb[:, 2].astype(jnp.float32))
    return xb[:, 0].astype(jnp.float32)


def _grad_kernel(x_ref, *rest, c, hb, has_halo):
    # x_ref block: (NB, C, TH, W)
    # halo blocks (only when has_halo): (NB, C, HB, W) just above / just below.
    # out block:   (NB, 1, TH, W)
    if has_halo:
        up_ref, dn_ref, o_ref = rest
    else:
        (o_ref,) = rest
        up_ref = dn_ref = None

    nb, _, th, w = x_ref.shape
    xg = _to_gray(x_ref[...], c)                      # (NB, TH, W) f32

    if has_halo:
        j = pl.program_id(1)
        last = pl.num_programs(1) - 1
        # Row just above this tile (row 7 of the "above" 8-row block) and row
        # just below it (row 0 of the "below" block).
        up = _to_gray(up_ref[...], c)[:, hb - 1:hb, :]   # (NB, 1, W)
        dn = _to_gray(dn_ref[...], c)[:, 0:1, :]         # (NB, 1, W)
        # Zero-padding semantics at the global image top / bottom.
        up = up * (j > 0).astype(jnp.float32)
        dn = dn * (j < last).astype(jnp.float32)
    else:
        up = jnp.zeros((nb, 1, w), jnp.float32)
        dn = jnp.zeros((nb, 1, w), jnp.float32)

    # Vertical gradient: x_v[r] = x[r+1] - x[r-1], zero-padded.
    #   kernel_v = [[0,-1,0],[0,0,0],[0,1,0]] (cross-correlation)
    if th > 1:
        x_up = jnp.concatenate([up, xg[:, :th - 1, :]], axis=1)   # x[r-1]
        x_dn = jnp.concatenate([xg[:, 1:, :], dn], axis=1)        # x[r+1]
    else:
        x_up, x_dn = up, dn
    x_v = x_dn - x_up

    # Horizontal gradient: x_h[k] = x[k+1] - x[k-1], zero-padded.
    #   kernel_h = [[0,0,0],[-1,0,1],[0,0,0]]
    if w > 1:
        zcol = jnp.zeros((nb, th, 1), jnp.float32)
        x_l = jnp.concatenate([zcol, xg[:, :, :w - 1]], axis=2)   # x[k-1]
        x_r = jnp.concatenate([xg[:, :, 1:], zcol], axis=2)       # x[k+1]
    else:
        x_l = jnp.zeros_like(xg)
        x_r = jnp.zeros_like(xg)
    x_h = x_r - x_l

    out = jnp.sqrt(x_v * x_v + x_h * x_h + 1e-6)
    o_ref[...] = out[:, None, :, :].astype(o_ref.dtype)


def grad_layer(x, *, target_block_bytes=8 * 1024 * 1024):
    """JAX/Pallas equivalent of GradLayer.forward. x: (N, C, H, W), C in {1,3}."""
    n, c, h, w = x.shape
    assert c in (1, 3), "GradLayer expects 1- or 3-channel NCHW input"

    item = jnp.dtype(x.dtype).itemsize
    bytes_per_row = c * w * item + w * item       # input + output bytes per image row

    # --- Row tile TH: largest multiple of 8 dividing H that fits the budget,
    #     or the whole image when it already fits (or no such divisor exists).
    max_rows = max(8, target_block_bytes // max(bytes_per_row, 1))
    if h <= max_rows:
        th = h
    else:
        th = h   # fallback: whole image per grid step (needs VMEM headroom)
        t = (min(max_rows, h) // 8) * 8
        while t >= 8:
            if h % t == 0:
                th = t
                break
            t -= 8
    n_row_tiles = h // th

    # --- Per-step image batch NB (only when a whole image fits one block).
    nb = 1
    if n_row_tiles == 1:
        cap = max(1, target_block_bytes // max(h * bytes_per_row, 1))
        for cand in range(min(n, cap, 8), 0, -1):
            if n % cand == 0:
                nb = cand
                break

    hb = min(8, h)                          # halo block height (8-row aligned)
    rt = th // hb if th % hb == 0 else 1    # row tile measured in halo blocks
    has_halo = n_row_tiles > 1              # only then th % 8 == 0 and h % 8 == 0

    def main_map(i, j):
        return (i, 0, j, 0)

    def up_map(i, j):    # 8-row block containing row j*TH - 1 (clamped at top)
        return (i, 0, jnp.maximum(j * rt - 1, 0), 0)

    def dn_map(i, j):    # 8-row block containing row (j+1)*TH (clamped at bottom)
        return (i, 0, jnp.minimum((j + 1) * rt, h // hb - 1), 0)

    in_specs = [pl.BlockSpec((nb, c, th, w), main_map)]
    args = (x,)
    if has_halo:
        in_specs += [pl.BlockSpec((nb, c, hb, w), up_map),
                     pl.BlockSpec((nb, c, hb, w), dn_map)]
        args = (x, x, x)

    kernel = functools.partial(_grad_kernel, c=c, hb=hb, has_halo=has_halo)

    return pl.pallas_call(
        kernel,
        out_shape=jax.ShapeDtypeStruct((n, 1, h, w), x.dtype),
        grid_spec=pltpu.PrefetchScalarGridSpec(
            num_scalar_prefetch=0,
            grid=(n // nb, n_row_tiles),
            in_specs=in_specs,
            out_specs=pl.BlockSpec((nb, 1, th, w), main_map),
        ),
        compiler_params=pltpu.CompilerParams(
            dimension_semantics=("parallel", "parallel"),
            vmem_limit_bytes=48 * 1024 * 1024,
        ),
    )(*args)


def _reference(x):
    """Pure-JAX replica of the PyTorch forward for correctness checking."""
    if x.shape[1] == 3:
        coeffs = jnp.array([65.738, 129.057, 25.064], x.dtype)
        coeffs = coeffs.reshape(1, 3, 1, 1) / 256.0
        x = (x * coeffs).sum(axis=1, keepdims=True)
    xp = jnp.pad(x, ((0, 0), (0, 0), (1, 1), (1, 1)))
    x_v = xp[:, :, 2:, 1:-1] - xp[:, :, :-2, 1:-1]
    x_h = xp[:, :, 1:-1, 2:] - xp[:, :, 1:-1, :-2]
    return jnp.sqrt(x_v ** 2 + x_h ** 2 + 1e-6)


if __name__ == "__main__":
    key = jax.random.PRNGKey(0)

    # RGB image batch: (N, C, H, W) = (2, 3, 16, 16) -> batched, halo-free path.
    x = jax.random.uniform(key, (2, 3, 16, 16), dtype=jnp.float32)
    out = jax.block_until_ready(grad_layer(x))
    assert out.shape == (2, 1, 16, 16), out.shape
    assert jnp.allclose(out, _reference(x), atol=1e-5, rtol=1e-5), "rgb mismatch"

    # 1-channel (no gray conversion) path.
    x1 = jax.random.uniform(jax.random.PRNGKey(1), (2, 1, 16, 16), jnp.float32)
    out1 = jax.block_until_ready(grad_layer(x1))
    assert jnp.allclose(out1, _reference(x1), atol=1e-5, rtol=1e-5), "gray mismatch"

    # Force the row-tiled + halo path with a tiny block budget to cover it too.
    x2 = jax.random.uniform(jax.random.PRNGKey(2), (1, 3, 64, 128), jnp.float32)
    out2 = jax.block_until_ready(grad_layer(x2, target_block_bytes=16 * 1024))
    assert jnp.allclose(out2, _reference(x2), atol=1e-5, rtol=1e-5), "tiled mismatch"

    print("KERNEL_OK")
</pallas_src>

<mosaic_0001>
module attributes {stable_mosaic.version = 11 : i64} {
  func.func @_grad_kernel(%arg0: i32, %arg1: i32, %arg2: memref<2x3x16x16xf32, #tpu.memory_space<vmem>>, %arg3: memref<2x1x16x16xf32, #tpu.memory_space<vmem>>) attributes {dimension_semantics = [#tpu.dimension_semantics<parallel>, #tpu.dimension_semantics<parallel>], iteration_bounds = array<i64: 1, 1>, scalar_prefetch = 0 : i64, scratch_operands = 0 : i64, tpu.core_type = #tpu.core_type<tc>, window_params = [{transform_indices = @transform_0, window_bounds = array<i64: 2, 3, 16, 16>}, {transform_indices = @transform_1, window_bounds = array<i64: 2, 1, 16, 16>}]} {
    %c0 = arith.constant 0 : index
    %c0_0 = arith.constant 0 : index
    %c0_1 = arith.constant 0 : index
    %c0_2 = arith.constant 0 : index
    %0 = vector.load %arg2[%c0, %c0_0, %c0_1, %c0_2] : memref<2x3x16x16xf32, #tpu.memory_space<vmem>>, vector<2x3x16x16xf32>
    %1 = vector.extract_strided_slice %0 {offsets = [0, 0, 0, 0], sizes = [2, 1, 16, 16], strides = [1, 1, 1, 1]} : vector<2x3x16x16xf32> to vector<2x1x16x16xf32>
    %2 = vector.shape_cast %1 : vector<2x1x16x16xf32> to vector<2x16x16xf32>
    %cst = arith.constant 0.256789058 : f32
    %3 = vector.broadcast %cst : f32 to vector<2x16x16xf32>
    %4 = arith.mulf %3, %2 : vector<2x16x16xf32>
    %5 = vector.extract_strided_slice %0 {offsets = [0, 1, 0, 0], sizes = [2, 1, 16, 16], strides = [1, 1, 1, 1]} : vector<2x3x16x16xf32> to vector<2x1x16x16xf32>
    %6 = vector.shape_cast %5 : vector<2x1x16x16xf32> to vector<2x16x16xf32>
    %cst_3 = arith.constant 0.504128933 : f32
    %7 = vector.broadcast %cst_3 : f32 to vector<2x16x16xf32>
    %8 = arith.mulf %7, %6 : vector<2x16x16xf32>
    %9 = arith.addf %4, %8 : vector<2x16x16xf32>
    %10 = vector.extract_strided_slice %0 {offsets = [0, 2, 0, 0], sizes = [2, 1, 16, 16], strides = [1, 1, 1, 1]} : vector<2x3x16x16xf32> to vector<2x1x16x16xf32>
    %11 = vector.shape_cast %10 : vector<2x1x16x16xf32> to vector<2x16x16xf32>
    %cst_4 = arith.constant 0.0979062467 : f32
    %12 = vector.broadcast %cst_4 : f32 to vector<2x16x16xf32>
    %13 = arith.mulf %12, %11 : vector<2x16x16xf32>
    %14 = arith.addf %9, %13 : vector<2x16x16xf32>
    %cst_5 = arith.constant 0.000000e+00 : f32
    %15 = vector.broadcast %cst_5 : f32 to vector<2x1x16xf32>
    %cst_6 = arith.constant 0.000000e+00 : f32
    %16 = vector.broadcast %cst_6 : f32 to vector<2x1x16xf32>
    %17 = vector.extract_strided_slice %14 {offsets = [0, 0, 0], sizes = [2, 15, 16], strides = [1, 1, 1]} : vector<2x16x16xf32> to vector<2x15x16xf32>
    %18 = tpu.concatenate %15, %17 in 1 : vector<2x1x16xf32>, vector<2x15x16xf32> -> vector<2x16x16xf32>
    %19 = vector.extract_strided_slice %14 {offsets = [0, 1, 0], sizes = [2, 15, 16], strides = [1, 1, 1]} : vector<2x16x16xf32> to vector<2x15x16xf32>
    %20 = tpu.concatenate %19, %16 in 1 : vector<2x15x16xf32>, vector<2x1x16xf32> -> vector<2x16x16xf32>
    %21 = arith.subf %20, %18 : vector<2x16x16xf32>
    %cst_7 = arith.constant 0.000000e+00 : f32
    %22 = vector.broadcast %cst_7 : f32 to vector<2x16x1xf32>
    %23 = vector.extract_strided_slice %14 {offsets = [0, 0, 0], sizes = [2, 16, 15], strides = [1, 1, 1]} : vector<2x16x16xf32> to vector<2x16x15xf32>
    %24 = tpu.concatenate %22, %23 in 2 : vector<2x16x1xf32>, vector<2x16x15xf32> -> vector<2x16x16xf32>
    %25 = vector.extract_strided_slice %14 {offsets = [0, 0, 1], sizes = [2, 16, 15], strides = [1, 1, 1]} : vector<2x16x16xf32> to vector<2x16x15xf32>
    %26 = tpu.concatenate %25, %22 in 2 : vector<2x16x15xf32>, vector<2x16x1xf32> -> vector<2x16x16xf32>
    %27 = arith.subf %26, %24 : vector<2x16x16xf32>
    %28 = arith.mulf %21, %21 : vector<2x16x16xf32>
    %29 = arith.mulf %27, %27 : vector<2x16x16xf32>
    %30 = arith.addf %28, %29 : vector<2x16x16xf32>
    %cst_8 = arith.constant 9.99999997E-7 : f32
    %31 = vector.broadcast %cst_8 : f32 to vector<2x16x16xf32>
    %32 = arith.addf %30, %31 : vector<2x16x16xf32>
    %33 = math.sqrt %32 : vector<2x16x16xf32>
    %34 = vector.shape_cast %33 : vector<2x16x16xf32> to vector<2x1x16x16xf32>
    %c0_9 = arith.constant 0 : index
    %c0_10 = arith.constant 0 : index
    %c0_11 = arith.constant 0 : index
    %c0_12 = arith.constant 0 : index
    %35 = vector.load %arg3[%c0_9, %c0_10, %c0_11, %c0_12] : memref<2x1x16x16xf32, #tpu.memory_space<vmem>>, vector<2x1x16x16xf32>
    tpu.vector_store %arg3[%c0_9, %c0_10, %c0_11, %c0_12], %34 {strides = array<i32>} : memref<2x1x16x16xf32, #tpu.memory_space<vmem>>, vector<2x1x16x16xf32>,
    return
  }
  func.func @transform_0(%arg0: i32, %arg1: i32) -> (i32, i32, i32, i32) {
    %c0_i32 = arith.constant 0 : i32
    %c0_i32_0 = arith.constant 0 : i32
    %c0_i32_1 = arith.constant 0 : i32
    return %arg0, %c0_i32, %arg1, %c0_i32_0 : i32, i32, i32, i32
  }
  func.func @transform_1(%arg0: i32, %arg1: i32) -> (i32, i32, i32, i32) {
    %c0_i32 = arith.constant 0 : i32
    %c0_i32_0 = arith.constant 0 : i32
    %c0_i32_1 = arith.constant 0 : i32
    return %arg0, %c0_i32, %arg1, %c0_i32_0 : i32, i32, i32, i32
  }
}

</mosaic_0001>

<llo_original>
// kernel: tpu_custom_call.1
$region0: #{tpu_custom_call.1}
  #allocation0 [shape = 'u32[]', space=smem, size = 0x4, offset = 0x4, fixed_abs, tag = 'smem constant byte address 0x4 - core index']
  #allocation1 [shape = 'u32[144,128]{1,0:T(1,128)}', space=vmem, size = 0x12000, scoped, tag = 'internal scratch']
  %s0 = inlined_call_operand.hbm [shape: f32[2,3,16,16], index: 0, kind: input, shape index: {}]
  %s1 = inlined_call_operand.hbm [shape: f32[2,1,16,16], index: 1, kind: output, shape index: {}]
  %s2 = sld [smem:[#allocation0]]
  $region18: #{tpu_custom_call.1} parent=0
    _
  %s4 = ssub.s32 1, %s2
  %s5 = scalar_select 0, %s4, %s2
  $region1: #{tpu_custom_call.1} parent=0
    #allocation2 [shape = 'u8[49152]{0}', space=vmem, size = 0xc000, scoped, tag = 'input window, operand 0, single buffered']
    #allocation3 [shape = 's32[1]{0}', space=sflag, size = 0x4, scoped, tag = 'scoped memory for tpu_custom_call.1']
    #allocation4 [shape = 's32[1]{0}', space=sflag, size = 0x4, scoped, tag = 'scoped memory for tpu_custom_call.1']
    #allocation5 [shape = 'u8[16384]{0}', space=vmem, size = 0x4000, scoped, tag = 'output window, operand 0, single buffered']
    %6 = vsyncpa [#allocation3], 0
    %7 = vsyncpa [#allocation4], 0
    // Predicated region
    $region2: #{tpu_custom_call.1} parent=1 // pred_check
      _
    $region3: #{tpu_custom_call.1} parent=1 // pred_check_branch
      %9 = sbr.rel (0) target = $region5
    $region4: #{tpu_custom_call.1} parent=1 // pred_region
      %s11 = ssub.s32 1536, 1536
      %12 = vsyncadd [#allocation3], %s11
      %s13 = sshll.u32 [#allocation2], 4
      %s14 = int_to_ptr.vmem [resolvable:$true] %s13
      %19 = dma.hbm_to_vmem [thread:$0]  %s0, 1536, %s14, [#allocation3], 128, 128, 8
    $region5: #{tpu_custom_call.1} parent=1 // pred_fallthru
      _
    // Predicated region
    $region6: #{tpu_custom_call.1} parent=1 // pred_check
      _
    $region7: #{tpu_custom_call.1} parent=1 // pred_check_branch
      %21 = sbr.rel (0) target = $region9
    $region8: #{tpu_custom_call.1} parent=1 // pred_region
      %22 = dma.done [#allocation3], 1536
    $region9: #{tpu_custom_call.1} parent=1 // pred_fallthru
      _
    %v23 = vld [vmem:[#allocation2] sm:$0xff]
    %v24 = vld [vmem:[#allocation2 + $0x8] sm:$0xff]
    %v25 = vld [vmem:[#allocation2 + $0x10] sm:$0xff]
    %v26 = vld [vmem:[#allocation2 + $0x18] sm:$0xff]
    %v27 = vld [vmem:[#allocation2 + $0x20] sm:$0xff]
    %v28 = vld [vmem:[#allocation2 + $0x28] sm:$0xff]
    %v29 = vld [vmem:[#allocation2 + $0x30] sm:$0xff]
    %v30 = vld [vmem:[#allocation2 + $0x38] sm:$0xff]
    %v31 = vld [vmem:[#allocation2 + $0x40] sm:$0xff]
    %v32 = vld [vmem:[#allocation2 + $0x48] sm:$0xff]
    %v33 = vld [vmem:[#allocation2 + $0x50] sm:$0xff]
    %v34 = vld [vmem:[#allocation2 + $0x58] sm:$0xff]
    %v35 = vmul.f32 %v23, 0.25678906
    %v36 = vmul.f32 %v24, 0.25678906
    %v37 = vmul.f32 %v29, 0.25678906
    %v38 = vmul.f32 %v30, 0.25678906
    %v39 = vmul.f32 %v25, 0.50412893
    %v40 = vmul.f32 %v26, 0.50412893
    %v41 = vmul.f32 %v31, 0.50412893
    %v42 = vmul.f32 %v32, 0.50412893
    %v43 = vadd.f32 %v35, %v39
    %v44 = vadd.f32 %v36, %v40
    %v45 = vadd.f32 %v37, %v41
    %v46 = vadd.f32 %v38, %v42
    %v47 = vmul.f32 %v27, 0.09790625
    %v48 = vmul.f32 %v28, 0.09790625
    %v49 = vmul.f32 %v33, 0.09790625
    %v50 = vmul.f32 %v34, 0.09790625
    %v51 = vadd.f32 %v43, %v47
    %v52 = vadd.f32 %v44, %v48
    %v53 = vadd.f32 %v45, %v49
    %v54 = vadd.f32 %v46, %v50
    %vm59 = vcmask 1040384
    %v60 = vrot.slane %v51, 7
    %v61 = vrot.slane %v52, 7
    %v62 = vsel %vm59, %v60, %v61
    %v63 = vrot.slane %v53, 7
    %v64 = vrot.slane %v54, 7
    %v65 = vsel %vm59, %v63, %v64
    %v70 = vsel %vm59, 0.0, %v60
    %v71 = vsel %vm59, 0.0, %v63
    %vm72 = vcmask 1046528
    %v73 = vrot.slane %v51, 1
    %v74 = vrot.slane %v52, 1
    %v75 = vsel %vm72, %v73, %v74
    %v76 = vrot.slane %v53, 1
    %v77 = vrot.slane %v54, 1
    %v78 = vsel %vm72, %v76, %v77
    %v83 = vsel %vm72, %v74, 0.0
    %v84 = vsel %vm72, %v77, 0.0
    %v85 = vsub.f32 %v75, %v70
    %v86 = vsub.f32 %v83, %v62
    %v87 = vsub.f32 %v78, %v71
    %v88 = vsub.f32 %v84, %v65
    %89 = vrot.lane.b32.xlu0 %v51, 1
    %v90 = vpop.permute.xlu0 %89
    %91 = vrot.lane.b32.xlu0 %v52, 1
    %v92 = vpop.permute.xlu0 %91
    %93 = vrot.lane.b32.xlu0 %v53, 1
    %v94 = vpop.permute.xlu0 %93
    %95 = vrot.lane.b32.xlu0 %v54, 1
    %v96 = vpop.permute.xlu0 %95
    %vm101 = vcmask 7168
    %v102 = vsel %vm101, 0.0, %v90
    %v103 = vsel %vm101, 0.0, %v92
    %v104 = vsel %vm101, 0.0, %v94
    %v105 = vsel %vm101, 0.0, %v96
    %106 = vrot.lane.b32.xlu0 %v51, 127
    %v107 = vpop.permute.xlu0 %106
    %108 = vrot.lane.b32.xlu0 %v52, 127
    %v109 = vpop.permute.xlu0 %108
    %110 = vrot.lane.b32.xlu0 %v53, 127
    %v111 = vpop.permute.xlu0 %110
    %112 = vrot.lane.b32.xlu0 %v54, 127
    %v113 = vpop.permute.xlu0 %112
    %vm118 = vcmask 121856
    %v119 = vsel %vm118, %v107, 0.0
    %v120 = vsel %vm118, %v109, 0.0
    %v121 = vsel %vm118, %v111, 0.0
    %v122 = vsel %vm118, %v113, 0.0
    %v123 = vsub.f32 %v119, %v102
    %v124 = vsub.f32 %v120, %v103
    %v125 = vsub.f32 %v121, %v104
    %v126 = vsub.f32 %v122, %v105
    %v127 = vmul.f32 %v85, %v85
    %v128 = vmul.f32 %v86, %v86
    %v129 = vmul.f32 %v87, %v87
    %v130 = vmul.f32 %v88, %v88
    %v131 = vmul.f32 %v123, %v123
    %v132 = vmul.f32 %v124, %v124
    %v133 = vmul.f32 %v125, %v125
    %v134 = vmul.f32 %v126, %v126
    %v135 = vadd.f32 %v127, %v131
    %v136 = vadd.f32 %v128, %v132
    %v137 = vadd.f32 %v129, %v133
    %v138 = vadd.f32 %v130, %v134
    %v139 = vadd.f32 %v135, 1e-06
    %v140 = vadd.f32 %v136, 1e-06
    %v141 = vadd.f32 %v137, 1e-06
    %v142 = vadd.f32 %v138, 1e-06
    %v143 = vrsqrt.pop %v139
    %v144 = vmul.f32 %v139, %v143
    %vm145 = vcmp.eq.f32.partialorder %v139, inf
    %v146 = vsel %vm145, %v139, %v144
    %vm147 = vcmp.eq.f32.partialorder %v139, 0.0
    %v148 = vand.u32 %v139, 2147483648
    %v149 = vsel %vm147, %v148, %v146
    %v150 = vrsqrt.pop %v140
    %v151 = vmul.f32 %v140, %v150
    %vm152 = vcmp.eq.f32.partialorder %v140, inf
    %v153 = vsel %vm152, %v140, %v151
    %vm154 = vcmp.eq.f32.partialorder %v140, 0.0
    %v155 = vand.u32 %v140, 2147483648
    %v156 = vsel %vm154, %v155, %v153
    %v157 = vrsqrt.pop %v141
    %v158 = vmul.f32 %v141, %v157
    %vm159 = vcmp.eq.f32.partialorder %v141, inf
    %v160 = vsel %vm159, %v141, %v158
    %vm161 = vcmp.eq.f32.partialorder %v141, 0.0
    %v162 = vand.u32 %v141, 2147483648
    %v163 = vsel %vm161, %v162, %v160
    %v164 = vrsqrt.pop %v142
    %v165 = vmul.f32 %v142, %v164
    %vm166 = vcmp.eq.f32.partialorder %v142, inf
    %v167 = vsel %vm166, %v142, %v165
    %vm168 = vcmp.eq.f32.partialorder %v142, 0.0
    %v169 = vand.u32 %v142, 2147483648
    %v170 = vsel %vm168, %v169, %v167
    %vm171 = vcmask 130048
    %172 = vst.msk [vmem:[#allocation5] sm:$0xff] %vm171, %v149
    %173 = vst.msk [vmem:[#allocation5 + $0x8] sm:$0xff] %vm171, %v156
    %174 = vst.msk [vmem:[#allocation5 + $0x10] sm:$0xff] %vm171, %v163
    %175 = vst.msk [vmem:[#allocation5 + $0x18] sm:$0xff] %vm171, %v170
    // Predicated region
    $region10: #{tpu_custom_call.1} parent=1 // pred_check
      _
    $region11: #{tpu_custom_call.1} parent=1 // pred_check_branch
      %177 = sbr.rel (0) target = $region13
    $region12: #{tpu_custom_call.1} parent=1 // pred_region
      %s179 = ssub.s32 512, 512
      %180 = vsyncadd [#allocation4], %s179
      %s181 = sshll.u32 [#allocation5], 4
      %s182 = int_to_ptr.vmem [resolvable:$true] %s181
      %187 = dma.vmem_to_hbm [thread:$0]  %s182, 512, %s1, [#allocation4], 128, 128, 8
    $region13: #{tpu_custom_call.1} parent=1 // pred_fallthru
      _
    // Predicated region
    $region14: #{tpu_custom_call.1} parent=1 // pred_check
      _
    $region15: #{tpu_custom_call.1} parent=1 // pred_check_branch
      %189 = sbr.rel (0) target = $region17
    $region16: #{tpu_custom_call.1} parent=1 // pred_region
      %190 = dma.done [#allocation4], 512
    $region17: #{tpu_custom_call.1} parent=1 // pred_fallthru
      _
    %191 = vsyncpa [#allocation3], 1
    %192 = vsyncpa [#allocation4], 1

</llo_original>
